<compile_context>
chip_gen: v5e
topology: v5e:2x2
jax: 0.10.0
libtpu: 0.0.40
codegen_flags: <defaults>
</compile_context>

<pallas_src>
import jax
import jax.numpy as jnp
from jax.experimental import pallas as pl
from jax.experimental.pallas import tpu as pltpu


def _round_up(x, m):
    return (x + m - 1) // m * m


def _choose_row_tile(N, tn_req):
    """Row tile: always a multiple of 128 (lane-dense transposed stores and a
    clean f32 XLU transpose), preferring one that divides N (no row pad)."""
    tn_req = max(128, (int(tn_req) // 128) * 128)
    if N <= tn_req:
        return _round_up(N, 128)
    for t in range(tn_req, 127, -128):
        if N % t == 0:
            return t
    return tn_req  # fall back: pad N up to a multiple of tn_req


def _make_patch_embed_kernel(K, D, Dp, tn, slab, eps):
    """y = patches @ W + b ; LayerNorm over the true D ; store transposed."""
    inv_d = 1.0 / float(D)
    n_slabs = tn // slab  # tn is a multiple of slab by construction

    def kernel(x_ref, w_ref, b_ref, g_ref, beta_ref, o_ref):
        # x_ref:  (tn, K)    patch rows (compute dtype)
        # w_ref:  (K, Dp)    projection weight, zero-padded to Dp=128 lanes
        # b_ref/g_ref/beta_ref: (1, Dp)  conv bias / LN gamma / LN beta (f32)
        # o_ref:  (D, tn)    channel-major output tile (true D, lane-dense)
        w = w_ref[...]
        bias = b_ref[...]
        gamma = g_ref[...]
        beta = beta_ref[...]
        # Lane mask for the true embed dim (hoisted: broadcasts don't CSE).
        lane = jax.lax.broadcasted_iota(jnp.int32, (1, Dp), 1)
        dmask = (lane < D).astype(jnp.float32)

        # Static (trace-time) loop over row slabs keeps f32 intermediates
        # small so they stay in vregs between the matmul and the normalize.
        for s in range(n_slabs):
            r0 = s * slab
            xs = x_ref[r0:r0 + slab, :]                              # (slab, K)
            # MXU projection with f32 accumulation (co-issues with the
            # VALU-heavy LayerNorm epilogue).
            y = jnp.dot(xs, w, preferred_element_type=jnp.float32) + bias
            # LayerNorm over the true D: padded lanes of w/bias are zero, so
            # the full-row sum equals the sum over D; the mask keeps padded
            # lanes of (y - mu) at exactly zero for the two-pass variance.
            mu = jnp.sum(y, axis=-1, keepdims=True) * inv_d          # (slab,1)
            d = y - mu * dmask
            var = jnp.sum(d * d, axis=-1, keepdims=True) * inv_d
            z = d * jax.lax.rsqrt(var + eps) * gamma + beta          # (slab,Dp)
            # XLU transpose so the store is channel-major; slicing the first
            # D=96 sublanes is tile-aligned (96 % 8 == 0).
            zt = z.T                                                 # (Dp,slab)
            o_ref[:, r0:r0 + slab] = zt[:D, :].astype(o_ref.dtype)

    return kernel


def patch_embed(x_nchw, conv_w, conv_b, ln_g, ln_b, *, patch_size, tn=1024,
                compute_dtype=jnp.bfloat16, out_dtype=None, eps=1e-5):
    """Pallas PatchEmbed forward.

    x_nchw : (B, C, H, W)
    conv_w : (embed_dim, C, p, p)   (PyTorch Conv2d weight layout)
    conv_b, ln_g, ln_b : (embed_dim,)
    returns (B, embed_dim, H//p, W//p)  — NCHW, same as the PyTorch module.
    """
    B, C, H, W = x_nchw.shape
    p = patch_size
    D = conv_w.shape[0]
    Hp, Wp = H // p, W // p
    N = Hp * Wp
    K = C * p * p
    if out_dtype is None:
        out_dtype = x_nchw.dtype

    # ---- patchify (XLA glue): (B,C,H,W) -> (B, N, C*p*p), cast, row-pad ----
    # reshape -> transpose -> astype -> pad fuse into one copy in XLA; with
    # K = 4 this glue is a few percent of total HBM traffic.
    patches = x_nchw.reshape(B, C, Hp, p, Wp, p)
    patches = patches.transpose(0, 2, 4, 1, 3, 5).reshape(B, N, K)
    patches = patches.astype(compute_dtype)

    tn_eff = _choose_row_tile(N, tn)
    n_pad = _round_up(N, tn_eff)
    if n_pad != N:
        patches = jnp.pad(patches, ((0, 0), (0, n_pad - N), (0, 0)))
    slab = 256 if tn_eff % 256 == 0 else 128

    # ---- lane-dense padding of the embed dim (D -> Dp = multiple of 128) ---
    Dp = _round_up(D, 128)
    pad_d = Dp - D
    w_mat = conv_w.reshape(D, K).T.astype(compute_dtype)             # (K, D)
    w_mat = jnp.pad(w_mat, ((0, 0), (0, pad_d)))                     # (K, Dp)
    b_row = jnp.pad(conv_b.astype(jnp.float32).reshape(1, D), ((0, 0), (0, pad_d)))
    g_row = jnp.pad(ln_g.astype(jnp.float32).reshape(1, D), ((0, 0), (0, pad_d)))
    beta_row = jnp.pad(ln_b.astype(jnp.float32).reshape(1, D), ((0, 0), (0, pad_d)))

    kernel = _make_patch_embed_kernel(K, D, Dp, tn_eff, slab, eps)

    out = pl.pallas_call(
        kernel,
        out_shape=jax.ShapeDtypeStruct((B, D, n_pad), out_dtype),
        grid_spec=pltpu.PrefetchScalarGridSpec(
            num_scalar_prefetch=0,
            grid=(B, n_pad // tn_eff),
            in_specs=[
                pl.BlockSpec((None, tn_eff, K), lambda b, j: (b, j, 0)),  # patches
                pl.BlockSpec((K, Dp), lambda b, j: (0, 0)),               # weight (invariant)
                pl.BlockSpec((1, Dp), lambda b, j: (0, 0)),               # conv bias
                pl.BlockSpec((1, Dp), lambda b, j: (0, 0)),               # LN gamma
                pl.BlockSpec((1, Dp), lambda b, j: (0, 0)),               # LN beta
            ],
            out_specs=pl.BlockSpec((None, D, tn_eff), lambda b, j: (b, 0, j)),
        ),
        compiler_params=pltpu.CompilerParams(
            dimension_semantics=("parallel", "parallel")),
    )(patches, w_mat, b_row, g_row, beta_row)

    if n_pad != N:
        out = out[:, :, :N]               # strip row padding (only if padded)
    return out.reshape(B, D, Hp, Wp)      # channel-major already: pure reshape


def _reference(x_nchw, conv_w, conv_b, ln_g, ln_b, patch_size):
    B, C, H, W = x_nchw.shape
    p = patch_size
    D = conv_w.shape[0]
    Hp, Wp = H // p, W // p
    patches = x_nchw.reshape(B, C, Hp, p, Wp, p).transpose(0, 2, 4, 1, 3, 5)
    patches = patches.reshape(B * Hp * Wp, C * p * p)
    y = patches @ conv_w.reshape(D, -1).T + conv_b
    mu = y.mean(-1, keepdims=True)
    var = ((y - mu) ** 2).mean(-1, keepdims=True)
    y = (y - mu) / jnp.sqrt(var + 1e-5) * ln_g + ln_b
    return y.reshape(B, Hp, Wp, D).transpose(0, 3, 1, 2)


if __name__ == "__main__":
    # Small shapes consistent with the module: in_chans=1, embed_dim=96,
    # patch_size=2, reduced spatial sizes.
    patch_size_ = 2
    embed_dim_ = 96
    B, C = 2, 1

    key = jax.random.PRNGKey(0)
    kx, kw, kb, kg, kbe, kx2 = jax.random.split(key, 6)

    conv_w = 0.1 * jax.random.normal(
        kw, (embed_dim_, C, patch_size_, patch_size_), dtype=jnp.float32)
    conv_b = 0.01 * jax.random.normal(kb, (embed_dim_,), dtype=jnp.float32)
    ln_g = 1.0 + 0.05 * jax.random.normal(kg, (embed_dim_,), dtype=jnp.float32)
    ln_b = 0.05 * jax.random.normal(kbe, (embed_dim_,), dtype=jnp.float32)

    # 1) 16x16 image (N=64 < 128): exercises the row-padding + output-slice
    #    path; default bf16 compute on the MXU, f32 output.
    x1 = jax.random.normal(kx, (B, C, 16, 16), dtype=jnp.float32)
    ref1 = _reference(x1, conv_w, conv_b, ln_g, ln_b, patch_size_)
    out1 = patch_embed(x1, conv_w, conv_b, ln_g, ln_b, patch_size=patch_size_)
    out1 = jax.block_until_ready(out1)
    assert out1.shape == (B, embed_dim_, 8, 8)
    assert jnp.allclose(out1, ref1, atol=3e-2, rtol=3e-2)

    # 2) 32x32 image (N=256), f32 compute, tn=128 -> multi-step grid with an
    #    exact divisor (no padding, no slice); tight tolerance.
    x2 = jax.random.normal(kx2, (B, C, 32, 32), dtype=jnp.float32)
    ref2 = _reference(x2, conv_w, conv_b, ln_g, ln_b, patch_size_)
    out2 = patch_embed(x2, conv_w, conv_b, ln_g, ln_b, patch_size=patch_size_,
                       tn=128, compute_dtype=jnp.float32)
    out2 = jax.block_until_ready(out2)
    assert out2.shape == (B, embed_dim_, 16, 16)
    assert jnp.allclose(out2, ref2, atol=1e-4, rtol=1e-4)

    # 3) bf16 output (halves store traffic for bandwidth-bound v5e); loose
    #    tolerance against the f32 reference.
    out3 = patch_embed(x1, conv_w, conv_b, ln_g, ln_b, patch_size=patch_size_,
                       out_dtype=jnp.bfloat16)
    out3 = jax.block_until_ready(out3)
    assert out3.dtype == jnp.bfloat16
    assert jnp.allclose(out3.astype(jnp.float32), ref1, atol=7e-2, rtol=7e-2)

    print("KERNEL_OK")
</pallas_src>

<mosaic_0001>
module attributes {stable_mosaic.version = 11 : i64} {
  func.func @kernel(%arg0: i32, %arg1: i32, %arg2: memref<1x128x4xbf16, #tpu.memory_space<vmem>>, %arg3: memref<4x128xbf16, #tpu.memory_space<vmem>>, %arg4: memref<1x128xf32, #tpu.memory_space<vmem>>, %arg5: memref<1x128xf32, #tpu.memory_space<vmem>>, %arg6: memref<1x128xf32, #tpu.memory_space<vmem>>, %arg7: memref<1x96x128xf32, #tpu.memory_space<vmem>>) attributes {dimension_semantics = [#tpu.dimension_semantics<parallel>, #tpu.dimension_semantics<parallel>], iteration_bounds = array<i64: 2, 1>, scalar_prefetch = 0 : i64, scratch_operands = 0 : i64, tpu.core_type = #tpu.core_type<tc>, window_params = [{transform_indices = @transform_0, window_bounds = array<i64: 1, 128, 4>}, {pipeline_mode = #tpu.pipeline_mode<synchronous>, transform_indices = @transform_1, window_bounds = array<i64: 4, 128>}, {pipeline_mode = #tpu.pipeline_mode<synchronous>, transform_indices = @transform_2, window_bounds = array<i64: 1, 128>}, {pipeline_mode = #tpu.pipeline_mode<synchronous>, transform_indices = @transform_3, window_bounds = array<i64: 1, 128>}, {pipeline_mode = #tpu.pipeline_mode<synchronous>, transform_indices = @transform_4, window_bounds = array<i64: 1, 128>}, {transform_indices = @transform_5, window_bounds = array<i64: 1, 96, 128>}]} {
    %c0 = arith.constant 0 : index
    %c0_0 = arith.constant 0 : index
    %0 = vector.load %arg3[%c0, %c0_0] : memref<4x128xbf16, #tpu.memory_space<vmem>>, vector<4x128xbf16>
    %c0_1 = arith.constant 0 : index
    %c0_2 = arith.constant 0 : index
    %1 = vector.load %arg4[%c0_1, %c0_2] : memref<1x128xf32, #tpu.memory_space<vmem>>, vector<1x128xf32>
    %c0_3 = arith.constant 0 : index
    %c0_4 = arith.constant 0 : index
    %2 = vector.load %arg5[%c0_3, %c0_4] : memref<1x128xf32, #tpu.memory_space<vmem>>, vector<1x128xf32>
    %c0_5 = arith.constant 0 : index
    %c0_6 = arith.constant 0 : index
    %3 = vector.load %arg6[%c0_5, %c0_6] : memref<1x128xf32, #tpu.memory_space<vmem>>, vector<1x128xf32>
    %4 = tpu.iota {dimensions = array<i32: 1>} : vector<1x128xi32>
    %c96_i32 = arith.constant 96 : i32
    %5 = vector.broadcast %c96_i32 : i32 to vector<1x128xi32>
    %6 = arith.cmpi slt, %4, %5 : vector<1x128xi32>
    %7 = arith.extui %6 : vector<1x128xi1> to vector<1x128xi32>
    %8 = arith.sitofp %7 : vector<1x128xi32> to vector<1x128xf32>
    %c0_7 = arith.constant 0 : index
    %c0_8 = arith.constant 0 : index
    %c0_9 = arith.constant 0 : index
    %9 = vector.load %arg2[%c0_7, %c0_8, %c0_9] : memref<1x128x4xbf16, #tpu.memory_space<vmem>>, vector<1x128x4xbf16>
    %10 = vector.shape_cast %9 : vector<1x128x4xbf16> to vector<128x4xbf16>
    %cst = arith.constant dense<0.000000e+00> : vector<128x128xf32>
    %11 = tpu.matmul %10, %0, %cst {dimension_numbers = #tpu.dot_dimension_numbers<[1], [0], [0], [1], [0, 0, 1, 1], [], []>} : vector<128x4xbf16>, vector<4x128xbf16>, vector<128x128xf32> -> vector<128x128xf32>
    %12 = vector.broadcast %1 : vector<1x128xf32> to vector<128x128xf32>
    %13 = arith.addf %11, %12 : vector<128x128xf32>
    %cst_10 = arith.constant dense<0.000000e+00> : vector<128xf32>
    %14 = vector.multi_reduction <add>, %13, %cst_10 [1] : vector<128x128xf32> to vector<128xf32>
    %15 = vector.shape_cast %14 : vector<128xf32> to vector<128x1xf32>
    %cst_11 = arith.constant 0.010416667 : f32
    %16 = vector.broadcast %cst_11 : f32 to vector<128x1xf32>
    %17 = arith.mulf %15, %16 : vector<128x1xf32>
    %18 = vector.broadcast %17 : vector<128x1xf32> to vector<128x128xf32>
    %19 = vector.broadcast %8 : vector<1x128xf32> to vector<128x128xf32>
    %20 = arith.mulf %18, %19 : vector<128x128xf32>
    %21 = arith.subf %13, %20 : vector<128x128xf32>
    %22 = arith.mulf %21, %21 : vector<128x128xf32>
    %cst_12 = arith.constant dense<0.000000e+00> : vector<128xf32>
    %23 = vector.multi_reduction <add>, %22, %cst_12 [1] : vector<128x128xf32> to vector<128xf32>
    %24 = vector.shape_cast %23 : vector<128xf32> to vector<128x1xf32>
    %cst_13 = arith.constant 0.010416667 : f32
    %25 = vector.broadcast %cst_13 : f32 to vector<128x1xf32>
    %26 = arith.mulf %24, %25 : vector<128x1xf32>
    %cst_14 = arith.constant 9.99999974E-6 : f32
    %27 = vector.broadcast %cst_14 : f32 to vector<128x1xf32>
    %28 = arith.addf %26, %27 : vector<128x1xf32>
    %29 = math.rsqrt %28 : vector<128x1xf32>
    %30 = vector.broadcast %29 : vector<128x1xf32> to vector<128x128xf32>
    %31 = arith.mulf %21, %30 : vector<128x128xf32>
    %32 = vector.broadcast %2 : vector<1x128xf32> to vector<128x128xf32>
    %33 = arith.mulf %31, %32 : vector<128x128xf32>
    %34 = vector.broadcast %3 : vector<1x128xf32> to vector<128x128xf32>
    %35 = arith.addf %33, %34 : vector<128x128xf32>
    %36 = tpu.transpose %35, [1, 0] : vector<128x128xf32> -> vector<128x128xf32>
    %37 = vector.extract_strided_slice %36 {offsets = [0, 0], sizes = [96, 128], strides = [1, 1]} : vector<128x128xf32> to vector<96x128xf32>
    %c0_15 = arith.constant 0 : index
    %c0_16 = arith.constant 0 : index
    %c0_17 = arith.constant 0 : index
    %38 = vector.load %arg7[%c0_15, %c0_16, %c0_17] : memref<1x96x128xf32, #tpu.memory_space<vmem>>, vector<1x96x128xf32>
    %39 = vector.shape_cast %38 : vector<1x96x128xf32> to vector<96x128xf32>
    %40 = vector.shape_cast %37 : vector<96x128xf32> to vector<1x96x128xf32>
    tpu.vector_store %arg7[%c0_15, %c0_16, %c0_17], %40 {strides = array<i32>} : memref<1x96x128xf32, #tpu.memory_space<vmem>>, vector<1x96x128xf32>,
    return
  }
  func.func @transform_0(%arg0: i32, %arg1: i32) -> (i32, i32, i32) {
    %c0_i32 = arith.constant 0 : i32
    %c0_i32_0 = arith.constant 0 : i32
    return %arg0, %arg1, %c0_i32 : i32, i32, i32
  }
  func.func @transform_1(%arg0: i32, %arg1: i32) -> (i32, i32) {
    %c0_i32 = arith.constant 0 : i32
    %c0_i32_0 = arith.constant 0 : i32
    %c0_i32_1 = arith.constant 0 : i32
    return %c0_i32, %c0_i32_0 : i32, i32
  }
  func.func @transform_2(%arg0: i32, %arg1: i32) -> (i32, i32) {
    %c0_i32 = arith.constant 0 : i32
    %c0_i32_0 = arith.constant 0 : i32
    %c0_i32_1 = arith.constant 0 : i32
    return %c0_i32, %c0_i32_0 : i32, i32
  }
  func.func @transform_3(%arg0: i32, %arg1: i32) -> (i32, i32) {
    %c0_i32 = arith.constant 0 : i32
    %c0_i32_0 = arith.constant 0 : i32
    %c0_i32_1 = arith.constant 0 : i32
    return %c0_i32, %c0_i32_0 : i32, i32
  }
  func.func @transform_4(%arg0: i32, %arg1: i32) -> (i32, i32) {
    %c0_i32 = arith.constant 0 : i32
    %c0_i32_0 = arith.constant 0 : i32
    %c0_i32_1 = arith.constant 0 : i32
    return %c0_i32, %c0_i32_0 : i32, i32
  }
  func.func @transform_5(%arg0: i32, %arg1: i32) -> (i32, i32, i32) {
    %c0_i32 = arith.constant 0 : i32
    %c0_i32_0 = arith.constant 0 : i32
    return %arg0, %c0_i32, %arg1 : i32, i32, i32
  }
}

</mosaic_0001>

<llo_original>
// kernel: tpu_custom_call.1
$region0: #{tpu_custom_call.1}
  #allocation0 [shape = 'u32[]', space=smem, size = 0x4, offset = 0x4, fixed_abs, tag = 'smem constant byte address 0x4 - core index']
  #allocation1 [shape = 'u32[72,128]{1,0:T(1,128)}', space=vmem, size = 0x9000, scoped, tag = 'internal scratch']
  %s0 = inlined_call_operand.vmem [shape: bf16[2,128,4], index: 0, kind: input, shape index: {}]
  %s1 = inlined_call_operand.vmem [shape: bf16[4,128], index: 1, kind: input, shape index: {}]
  %s2 = inlined_call_operand.vmem [shape: f32[1,128], index: 2, kind: input, shape index: {}]
  %s3 = inlined_call_operand.vmem [shape: f32[1,128], index: 3, kind: input, shape index: {}]
  %s4 = inlined_call_operand.vmem [shape: f32[1,128], index: 4, kind: input, shape index: {}]
  %s5 = inlined_call_operand.hbm [shape: f32[2,96,128], index: 5, kind: output, shape index: {}]
  %s6 = sld [smem:[#allocation0]]
  $region53: #{tpu_custom_call.1} parent=0
    _
  %s8 = ssub.s32 1, %s6
  %s9 = scalar_select 0, %s8, %s6
  $region1: #{tpu_custom_call.1} parent=0
    #allocation2 [shape = 'u8[98304]{0}', space=vmem, size = 0x18000, scoped, tag = 'output window, operand 0']
    #allocation3 [shape = 's32[2]{0}', space=sflag, size = 0x8, scoped, tag = 'scoped memory for tpu_custom_call.1']
    %10 = vsyncpa [#allocation3], 0
    %s11 = scalar_lea.sflag [#allocation3], 1
    %12 = vsyncpa %s11, 0
    loop: start=0, step=1, limit=4
    $region2: #{tpu_custom_call.1} parent=1 // loop_pre_header
      _
    $region3: #{tpu_custom_call.1} parent=1 // loop_header
      %s14 = sphi 0, %s18
      %p15 = scmp.ge.s32.totalorder %s14, 4
      %s21 = sphi 0, %s33
      %s22 = sphi 0, %s29
      %s23 = sphi 0, %s21
      %s24 = sphi 0, %s22
      %s25 = sphi 0, %s23
      %s26 = sphi 0, %s24
      %s38 = sphi 0, %s40
      %s41 = sphi 0, %s38
      %s42 = sphi 0, %s41
      %s58 = sphi 0, %s42
      %s62 = sphi 0, %s62
      %s64 = sphi 0, %s62
      %s65 = sphi 0, %s64
      %s79 = sphi 0, %s65
      %s83 = sphi 0, %s83
      %s85 = sphi 0, %s83
      %s86 = sphi 0, %s85
      %s100 = sphi 0, %s86
      %s104 = sphi 0, %s104
      %s106 = sphi 0, %s104
      %s107 = sphi 0, %s106
      %s121 = sphi 0, %s107
      %s125 = sphi 0, %s125
      %s127 = sphi 0, %s125
      %s128 = sphi 0, %s127
      %s142 = sphi 0, %s128
      %s150 = sphi 0, %s152
      %s153 = sphi 0, %s150
      %s154 = sphi 0, %s153
      %s170 = sphi 0, %s154
    $region4: #{tpu_custom_call.1} parent=1 // loop_header_branch
      %17 = sbr.rel (%p15) target = $region8
    $region5: #{tpu_custom_call.1} parent=1 // loop_body
      %s19 = ssub.s32 %s14, 1
      %s20 = ssub.s32 %s14, 2
      %s27 = sadd.s32 1, %s22
      %p28 = scmp.ge.s32.totalorder %s27, 1
      %s29 = scalar_select %p28, 0, %s27
      %s30 = sadd.s32 1, %s21
      %s31 = scalar_select %p28, %s30, %s21
      %p32 = scmp.ge.s32.totalorder %s31, 2
      %s33 = scalar_select %p32, 0, %s31
      %s34 = ssub.s32 %s21, %s33
      %s35 = ssub.s32 %s22, %s29
      %s36 = sor.u32 %s34, %s35
      %p37 = scmp.eq.s32.totalorder %s36, 0
      %s39 = sadd.s32 %s38, 1
      %s40 = scalar_select %p37, %s38, %s39
      %p43 = pneg %p37
      %p44 = scmp.eq.s32.totalorder %s14, 1
      %p45 = por %p43, %p44
      %p46 = scmp.ne.s32.totalorder %s38, %s41
      %p47 = scmp.eq.s32.totalorder %s14, 0
      %p48 = por %p46, %p47
      %p49 = scmp.ne.s32.totalorder %s38, %s41
      %p50 = scmp.eq.s32.totalorder %s19, 1
      %p51 = por %p49, %p50
      %p52 = scmp.ne.s32.totalorder %s41, %s42
      %p53 = scmp.eq.s32.totalorder %s19, 0
      %p54 = por %p52, %p53
      %p55 = scmp.ne.s32.totalorder %s41, %s42
      %p56 = scmp.eq.s32.totalorder %s20, 1
      %p57 = por %p55, %p56
      %p59 = scmp.ne.s32.totalorder %s42, %s58
      %p60 = scmp.eq.s32.totalorder %s20, 0
      %p61 = por %p59, %p60
      %s63 = sadd.s32 %s62, 1
      %p66 = scmp.eq.s32.totalorder %s14, 1
      %p67 = scmp.ne.s32.totalorder %s62, %s64
      %p68 = scmp.eq.s32.totalorder %s14, 0
      %p69 = por %p67, %p68
      %p70 = scmp.ne.s32.totalorder %s62, %s64
      %p71 = scmp.eq.s32.totalorder %s19, 1
      %p72 = por %p70, %p71
      %p73 = scmp.ne.s32.totalorder %s64, %s65
      %p74 = scmp.eq.s32.totalorder %s19, 0
      %p75 = por %p73, %p74
      %p76 = scmp.ne.s32.totalorder %s64, %s65
      %p77 = scmp.eq.s32.totalorder %s20, 1
      %p78 = por %p76, %p77
      %p80 = scmp.ne.s32.totalorder %s65, %s79
      %p81 = scmp.eq.s32.totalorder %s20, 0
      %p82 = por %p80, %p81
      %s84 = sadd.s32 %s83, 1
      %p87 = scmp.eq.s32.totalorder %s14, 1
      %p88 = scmp.ne.s32.totalorder %s83, %s85
      %p89 = scmp.eq.s32.totalorder %s14, 0
      %p90 = por %p88, %p89
      %p91 = scmp.ne.s32.totalorder %s83, %s85
      %p92 = scmp.eq.s32.totalorder %s19, 1
      %p93 = por %p91, %p92
      %p94 = scmp.ne.s32.totalorder %s85, %s86
      %p95 = scmp.eq.s32.totalorder %s19, 0
      %p96 = por %p94, %p95
      %p97 = scmp.ne.s32.totalorder %s85, %s86
      %p98 = scmp.eq.s32.totalorder %s20, 1
      %p99 = por %p97, %p98
      %p101 = scmp.ne.s32.totalorder %s86, %s100
      %p102 = scmp.eq.s32.totalorder %s20, 0
      %p103 = por %p101, %p102
      %s105 = sadd.s32 %s104, 1
      %p108 = scmp.eq.s32.totalorder %s14, 1
      %p109 = scmp.ne.s32.totalorder %s104, %s106
      %p110 = scmp.eq.s32.totalorder %s14, 0
      %p111 = por %p109, %p110
      %p112 = scmp.ne.s32.totalorder %s104, %s106
      %p113 = scmp.eq.s32.totalorder %s19, 1
      %p114 = por %p112, %p113
      %p115 = scmp.ne.s32.totalorder %s106, %s107
      %p116 = scmp.eq.s32.totalorder %s19, 0
      %p117 = por %p115, %p116
      %p118 = scmp.ne.s32.totalorder %s106, %s107
      %p119 = scmp.eq.s32.totalorder %s20, 1
      %p120 = por %p118, %p119
      %p122 = scmp.ne.s32.totalorder %s107, %s121
      %p123 = scmp.eq.s32.totalorder %s20, 0
      %p124 = por %p122, %p123
      %s126 = sadd.s32 %s125, 1
      %p129 = scmp.eq.s32.totalorder %s14, 1
      %p130 = scmp.ne.s32.totalorder %s125, %s127
      %p131 = scmp.eq.s32.totalorder %s14, 0
      %p132 = por %p130, %p131
      %p133 = scmp.ne.s32.totalorder %s125, %s127
      %p134 = scmp.eq.s32.totalorder %s19, 1
      %p135 = por %p133, %p134
      %p136 = scmp.ne.s32.totalorder %s127, %s128
      %p137 = scmp.eq.s32.totalorder %s19, 0
      %p138 = por %p136, %p137
      %p139 = scmp.ne.s32.totalorder %s127, %s128
      %p140 = scmp.eq.s32.totalorder %s20, 1
      %p141 = por %p139, %p140
      %p143 = scmp.ne.s32.totalorder %s128, %s142
      %p144 = scmp.eq.s32.totalorder %s20, 0
      %p145 = por %p143, %p144
      %s146 = ssub.s32 %s21, %s33
      %s147 = ssub.s32 %s22, %s29
      %s148 = sor.u32 %s146, %s147
      %p149 = scmp.eq.s32.totalorder %s148, 0
      %s151 = sadd.s32 %s150, 1
      %s152 = scalar_select %p149, %s150, %s151
      %p155 = pneg %p149
      %p156 = scmp.eq.s32.totalorder %s14, 1
      %p157 = por %p155, %p156
      %p158 = scmp.ne.s32.totalorder %s150, %s153
      %p159 = scmp.eq.s32.totalorder %s14, 0
      %p160 = por %p158, %p159
      %p161 = scmp.ne.s32.totalorder %s150, %s153
      %p162 = scmp.eq.s32.totalorder %s19, 1
      %p163 = por %p161, %p162
      %p164 = scmp.ne.s32.totalorder %s153, %s154
      %p165 = scmp.eq.s32.totalorder %s19, 0
      %p166 = por %p164, %p165
      %p167 = scmp.ne.s32.totalorder %s153, %s154
      %p168 = scmp.eq.s32.totalorder %s20, 1
      %p169 = por %p167, %p168
      %p171 = scmp.ne.s32.totalorder %s154, %s170
      %p172 = scmp.eq.s32.totalorder %s20, 0
      %p173 = por %p171, %p172
      %p174 = scmp.le.s32.totalorder 1, %s14
      %p175 = scmp.lt.s32.totalorder %s14, 3
      %p176 = pnand %p174, %p175
      %p177 = pneg %p176
      // Predicated region
      $region9: #{tpu_custom_call.1} parent=5 // pred_check
        _
      $region10: #{tpu_custom_call.1} parent=5 // pred_check_branch
        %179 = sbr.rel (%p176) target = $region12
      $region11: #{tpu_custom_call.1} parent=5 // pred_region
        %s180 = ssub.s32 %s14, 1
        // Predicated region
        $region13: #{tpu_custom_call.1} parent=11 // pred_check
          %p181 = pneg %p75
        $region14: #{tpu_custom_call.1} parent=11 // pred_check_branch
          %183 = sbr.rel (%p181) target = $region16
        $region15: #{tpu_custom_call.1} parent=11 // pred_region
          _
        $region16: #{tpu_custom_call.1} parent=11 // pred_fallthru
          _
        // Predicated region
        $region17: #{tpu_custom_call.1} parent=11 // pred_check
          %p184 = pneg %p96
        $region18: #{tpu_custom_call.1} parent=11 // pred_check_branch
          %186 = sbr.rel (%p184) target = $region20
        $region19: #{tpu_custom_call.1} parent=11 // pred_region
          _
        $region20: #{tpu_custom_call.1} parent=11 // pred_fallthru
          _
        // Predicated region
        $region21: #{tpu_custom_call.1} parent=11 // pred_check
          %p187 = pneg %p117
        $region22: #{tpu_custom_call.1} parent=11 // pred_check_branch
          %189 = sbr.rel (%p187) target = $region24
        $region23: #{tpu_custom_call.1} parent=11 // pred_region
          _
        $region24: #{tpu_custom_call.1} parent=11 // pred_fallthru
          _
        // Predicated region
        $region25: #{tpu_custom_call.1} parent=11 // pred_check
          %p190 = pneg %p138
        $region26: #{tpu_custom_call.1} parent=11 // pred_check_branch
          %192 = sbr.rel (%p190) target = $region28
        $region27: #{tpu_custom_call.1} parent=11 // pred_region
          _
        $region28: #{tpu_custom_call.1} parent=11 // pred_fallthru
          _
      $region12: #{tpu_custom_call.1} parent=5 // pred_fallthru
        _
      %p193 = scmp.lt.s32.totalorder %s14, 2
      // Predicated region
      $region29: #{tpu_custom_call.1} parent=5 // pred_check
        %p194 = pneg %p193
      $region30: #{tpu_custom_call.1} parent=5 // pred_check_branch
        %196 = sbr.rel (%p194) target = $region32
      $region31: #{tpu_custom_call.1} parent=5 // pred_region
        // Predicated region
        $region33: #{tpu_custom_call.1} parent=31 // pred_check
          %p197 = pneg %p48
        $region34: #{tpu_custom_call.1} parent=31 // pred_check_branch
          %199 = sbr.rel (%p197) target = $region36
        $region35: #{tpu_custom_call.1} parent=31 // pred_region
          %s200 = smul.u32 16, %s22
          %p201 = scmp.lt.s32.totalorder %s21, 1
          %s202 = scalar_select %p201, %s21, 1
          %p203 = scmp.lt.s32.totalorder %s200, 15
          %s204 = scalar_select %p203, %s200, 15
          %s205 = smul.addr %s202, 16
          %s206 = sadd.s32 %s204, %s205
          %s207 = smul.addr %s206, 4
          %s208 = scalar_lea.vmem %s0, %s207
          %s209 = smul.u32 16, %s22
        $region36: #{tpu_custom_call.1} parent=31 // pred_fallthru
          _
      $region32: #{tpu_custom_call.1} parent=5 // pred_fallthru
        _
      %p210 = scmp.le.s32.totalorder 1, %s14
      %p211 = scmp.lt.s32.totalorder %s14, 3
      %p212 = pnand %p210, %p211
      %p213 = pneg %p212
      // Predicated region
      $region37: #{tpu_custom_call.1} parent=5 // pred_check
        _
      $region38: #{tpu_custom_call.1} parent=5 // pred_check_branch
        %215 = sbr.rel (%p212) target = $region40
      $region39: #{tpu_custom_call.1} parent=5 // pred_region
        %s216 = ssub.s32 %s14, 1
        %s217 = smul.u32 16, %s24
        %p218 = scmp.lt.s32.totalorder %s23, 1
        %s219 = scalar_select %p218, %s23, 1
        %p220 = scmp.lt.s32.totalorder %s217, 15
        %s221 = scalar_select %p220, %s217, 15
        %s222 = smul.addr %s219, 16
        %s223 = sadd.s32 %s221, %s222
        %s224 = smul.addr %s223, 4
        %s225 = scalar_lea.vmem %s0, %s224
        %p226 = pneg %p54
        %p227 = pneg %p51
        %p228 = pneg %p75
        %p229 = pneg %p72
        %p230 = pneg %p96
        %p231 = pneg %p93
        %p232 = pneg %p117
        %p233 = pneg %p114
        %p234 = pneg %p138
        %p235 = pneg %p135
        %p236 = pneg %p166
        %p237 = pneg %p163
        %s238 = sand.u32 %s153, 1
        %s239 = scalar_lea.sflag [#allocation3], %s238
        %s240 = sand.u32 %s153, 1
        %s241 = smul.addr %s240, 96
        %s242 = scalar_lea.vmem [#allocation2], %s241
        %s243 = smul.u32 16, %s24
        %p244 = scmp.lt.s32.totalorder %s23, 1
        %s245 = scalar_select %p244, %s23, 1
        %p246 = scmp.lt.s32.totalorder %s243, 15
        %s247 = scalar_select %p246, %s243, 15
        %s248 = smul.addr %s245, 16
        %s249 = sadd.s32 %s247, %s248
        %s250 = smul.addr %s249, 4
        %s251 = scalar_lea.vmem %s0, %s250
        %s252 = smul.u32 16, %s24
        %v254 = vld [vmem:[%s1] sm:$0x3]
        %v255 = vld [vmem:[%s2] sm:$0x1]
        %v256 = vld [vmem:[%s3] sm:$0x1]
        %v257 = vld [vmem:[%s4] sm:$0x1]
        %v258 = vlaneseq
        %v259 = vand.u32 %v258, 127
        %vm260 = vcmp.lt.s32.totalorder %v259, 96
        %v261 = vsel %vm260, 1, 0
        %v262 = vcvt.s32.f32 %v261
        %v263 = vld [vmem:[%s251] sm:$0xf]
        %v264 = vld [vmem:[%s251 + $0x4] sm:$0xf]
        %v265 = vld [vmem:[%s251 + $0x8] sm:$0xf]
        %v266 = vld [vmem:[%s251 + $0xc] sm:$0xf]
        %v267 = vld [vmem:[%s251 + $0x10] sm:$0xf]
        %v268 = vld [vmem:[%s251 + $0x14] sm:$0xf]
        %v269 = vld [vmem:[%s251 + $0x18] sm:$0xf]
        %v270 = vld [vmem:[%s251 + $0x1c] sm:$0xf]
        %v271 = vld [vmem:[%s251 + $0x20] sm:$0xf]
        %v272 = vld [vmem:[%s251 + $0x24] sm:$0xf]
        %v273 = vld [vmem:[%s251 + $0x28] sm:$0xf]
        %v274 = vld [vmem:[%s251 + $0x2c] sm:$0xf]
        %v275 = vld [vmem:[%s251 + $0x30] sm:$0xf]
        %v276 = vld [vmem:[%s251 + $0x34] sm:$0xf]
        %v277 = vld [vmem:[%s251 + $0x38] sm:$0xf]
        %v278 = vld [vmem:[%s251 + $0x3c] sm:$0xf]
        %v280 = vperm.slane %v255, 0
        %v298 = vunpack.c.l.b16 %v263
        %v299 = vunpack.c.l.b16 %v264
        %v300 = vunpack.c.l.b16 %v265
        %v301 = vunpack.c.l.b16 %v266
        %v302 = vunpack.c.l.b16 %v267
        %v303 = vunpack.c.l.b16 %v268
        %v304 = vunpack.c.l.b16 %v269
        %v305 = vunpack.c.l.b16 %v270
        %v306 = vunpack.c.l.b16 %v271
        %v307 = vunpack.c.l.b16 %v272
        %v308 = vunpack.c.l.b16 %v273
        %v309 = vunpack.c.l.b16 %v274
        %v310 = vunpack.c.l.b16 %v275
        %v311 = vunpack.c.l.b16 %v276
        %v312 = vunpack.c.l.b16 %v277
        %v313 = vunpack.c.l.b16 %v278
        %v314 = vpack.c.b16 %v299, %v298
        %v315 = vpack.c.b16 %v301, %v300
        %v316 = vpack.c.b16 %v303, %v302
        %v317 = vpack.c.b16 %v305, %v304
        %v318 = vpack.c.b16 %v307, %v306
        %v319 = vpack.c.b16 %v309, %v308
        %v320 = vpack.c.b16 %v311, %v310
        %v321 = vpack.c.b16 %v313, %v312
        %vm322 = vcmask 31744
        %v324 = vsel %vm322, %v314, 0
        %v327 = vsel %vm322, %v315, 0
        %v330 = vsel %vm322, %v316, 0
        %v333 = vsel %vm322, %v317, 0
        %v336 = vsel %vm322, %v318, 0
        %v339 = vsel %vm322, %v319, 0
        %v342 = vsel %vm322, %v320, 0
        %v345 = vsel %vm322, %v321, 0
        %vm347 = vcmask 1041408
        %v349 = vsel %vm347, %v254, 0
        %351 = vmatpush.bf16.msra.mxu0 0
        %352 = vmatpush.bf16.msra.mxu0 0
        %353 = vmatpush.bf16.msra.mxu0 0
        %354 = vmatpush.bf16.msra.mxu0 0
        %355 = vmatpush.bf16.msra.mxu0 0
        %356 = vmatpush.bf16.msra.mxu0 0
        %357 = vmatpush.bf16.msra.mxu0 0
        %358 = vmatpush.bf16.msra.mxu0 %v349
        %359 = vmatmul.bf16.gmra.mxu0 %v324
        %v360 = vpop.f32.mrf.mxu0
        %v361 = vadd.f32 %v280, %v360
        %v362 = vpop.f32.mrf.mxu0
        %v363 = vadd.f32 %v280, %v362
        %364 = vmatmul.bf16.gmra.mxu0 %v327
        %v365 = vpop.f32.mrf.mxu0
        %v366 = vadd.f32 %v280, %v365
        %v367 = vpop.f32.mrf.mxu0
        %v368 = vadd.f32 %v280, %v367
        %369 = vmatmul.bf16.gmra.mxu0 %v330
        %v370 = vpop.f32.mrf.mxu0
        %v371 = vadd.f32 %v280, %v370
        %v372 = vpop.f32.mrf.mxu0
        %v373 = vadd.f32 %v280, %v372
        %374 = vmatmul.bf16.gmra.mxu0 %v333
        %v375 = vpop.f32.mrf.mxu0
        %v376 = vadd.f32 %v280, %v375
        %v377 = vpop.f32.mrf.mxu0
        %v378 = vadd.f32 %v280, %v377
        %379 = vmatmul.bf16.gmra.mxu0 %v336
        %v380 = vpop.f32.mrf.mxu0
        %v381 = vadd.f32 %v280, %v380
        %v382 = vpop.f32.mrf.mxu0
        %v383 = vadd.f32 %v280, %v382
        %384 = vmatmul.bf16.gmra.mxu0 %v339
        %v385 = vpop.f32.mrf.mxu0
        %v386 = vadd.f32 %v280, %v385
        %v387 = vpop.f32.mrf.mxu0
        %v388 = vadd.f32 %v280, %v387
        %389 = vmatmul.bf16.gmra.mxu0 %v342
        %v390 = vpop.f32.mrf.mxu0
        %v391 = vadd.f32 %v280, %v390
        %v392 = vpop.f32.mrf.mxu0
        %v393 = vadd.f32 %v280, %v392
        %394 = vmatmul.bf16.gmra.mxu0 %v345
        %v395 = vpop.f32.mrf.mxu0
        %v396 = vadd.f32 %v280, %v395
        %v397 = vpop.f32.mrf.mxu0
        %v398 = vadd.f32 %v280, %v397
        %399 = vdwg.mxu0
        %400 = vadd.xlane.f32.xlu0 %v361
        %v401 = vpop.xlane.xlu0 %400
        %402 = vadd.xlane.f32.xlu0 %v363
        %v403 = vpop.xlane.xlu0 %402
        %404 = vadd.xlane.f32.xlu0 %v366
        %v405 = vpop.xlane.xlu0 %404
        %406 = vadd.xlane.f32.xlu0 %v368
        %v407 = vpop.xlane.xlu0 %406
        %408 = vadd.xlane.f32.xlu0 %v371
        %v409 = vpop.xlane.xlu0 %408
        %410 = vadd.xlane.f32.xlu0 %v373
        %v411 = vpop.xlane.xlu0 %410
        %412 = vadd.xlane.f32.xlu0 %v376
        %v413 = vpop.xlane.xlu0 %412
        %414 = vadd.xlane.f32.xlu0 %v378
        %v415 = vpop.xlane.xlu0 %414
        %416 = vadd.xlane.f32.xlu0 %v381
        %v417 = vpop.xlane.xlu0 %416
        %418 = vadd.xlane.f32.xlu0 %v383
        %v419 = vpop.xlane.xlu0 %418
        %420 = vadd.xlane.f32.xlu0 %v386
        %v421 = vpop.xlane.xlu0 %420
        %422 = vadd.xlane.f32.xlu0 %v388
        %v423 = vpop.xlane.xlu0 %422
        %424 = vadd.xlane.f32.xlu0 %v391
        %v425 = vpop.xlane.xlu0 %424
        %426 = vadd.xlane.f32.xlu0 %v393
        %v427 = vpop.xlane.xlu0 %426
        %428 = vadd.xlane.f32.xlu0 %v396
        %v429 = vpop.xlane.xlu0 %428
        %430 = vadd.xlane.f32.xlu0 %v398
        %v431 = vpop.xlane.xlu0 %430
        %v432 = vmul.f32 %v401, 0.010416667
        %v433 = vmul.f32 %v403, 0.010416667
        %v434 = vmul.f32 %v405, 0.010416667
        %v435 = vmul.f32 %v407, 0.010416667
        %v436 = vmul.f32 %v409, 0.010416667
        %v437 = vmul.f32 %v411, 0.010416667
        %v438 = vmul.f32 %v413, 0.010416667
        %v439 = vmul.f32 %v415, 0.010416667
        %v440 = vmul.f32 %v417, 0.010416667
        %v441 = vmul.f32 %v419, 0.010416667
        %v442 = vmul.f32 %v421, 0.010416667
        %v443 = vmul.f32 %v423, 0.010416667
        %v444 = vmul.f32 %v425, 0.010416667
        %v445 = vmul.f32 %v427, 0.010416667
        %v446 = vmul.f32 %v429, 0.010416667
        %v447 = vmul.f32 %v431, 0.010416667
        %v448 = vmul.f32 %v432, %v262
        %v449 = vmul.f32 %v433, %v262
        %v450 = vmul.f32 %v434, %v262
        %v451 = vmul.f32 %v435, %v262
        %v452 = vmul.f32 %v436, %v262
        %v453 = vmul.f32 %v437, %v262
        %v454 = vmul.f32 %v438, %v262
        %v455 = vmul.f32 %v439, %v262
        %v456 = vmul.f32 %v440, %v262
        %v457 = vmul.f32 %v441, %v262
        %v458 = vmul.f32 %v442, %v262
        %v459 = vmul.f32 %v443, %v262
        %v460 = vmul.f32 %v444, %v262
        %v461 = vmul.f32 %v445, %v262
        %v462 = vmul.f32 %v446, %v262
        %v463 = vmul.f32 %v447, %v262
        %v464 = vsub.f32 %v361, %v448
        %v465 = vsub.f32 %v363, %v449
        %v466 = vsub.f32 %v366, %v450
        %v467 = vsub.f32 %v368, %v451
        %v468 = vsub.f32 %v371, %v452
        %v469 = vsub.f32 %v373, %v453
        %v470 = vsub.f32 %v376, %v454
        %v471 = vsub.f32 %v378, %v455
        %v472 = vsub.f32 %v381, %v456
        %v473 = vsub.f32 %v383, %v457
        %v474 = vsub.f32 %v386, %v458
        %v475 = vsub.f32 %v388, %v459
        %v476 = vsub.f32 %v391, %v460
        %v477 = vsub.f32 %v393, %v461
        %v478 = vsub.f32 %v396, %v462
        %v479 = vsub.f32 %v398, %v463
        %v480 = vmul.f32 %v464, %v464
        %v481 = vmul.f32 %v465, %v465
        %v482 = vmul.f32 %v466, %v466
        %v483 = vmul.f32 %v467, %v467
        %v484 = vmul.f32 %v468, %v468
        %v485 = vmul.f32 %v469, %v469
        %v486 = vmul.f32 %v470, %v470
        %v487 = vmul.f32 %v471, %v471
        %v488 = vmul.f32 %v472, %v472
        %v489 = vmul.f32 %v473, %v473
        %v490 = vmul.f32 %v474, %v474
        %v491 = vmul.f32 %v475, %v475
        %v492 = vmul.f32 %v476, %v476
        %v493 = vmul.f32 %v477, %v477
        %v494 = vmul.f32 %v478, %v478
        %v495 = vmul.f32 %v479, %v479
        %496 = vadd.xlane.f32.xlu0 %v480
        %v497 = vpop.xlane.xlu0 %496
        %498 = vadd.xlane.f32.xlu0 %v481
        %v499 = vpop.xlane.xlu0 %498
        %500 = vadd.xlane.f32.xlu0 %v482
        %v501 = vpop.xlane.xlu0 %500
        %502 = vadd.xlane.f32.xlu0 %v483
        %v503 = vpop.xlane.xlu0 %502
        %504 = vadd.xlane.f32.xlu0 %v484
        %v505 = vpop.xlane.xlu0 %504
        %506 = vadd.xlane.f32.xlu0 %v485
        %v507 = vpop.xlane.xlu0 %506
        %508 = vadd.xlane.f32.xlu0 %v486
        %v509 = vpop.xlane.xlu0 %508
        %510 = vadd.xlane.f32.xlu0 %v487
        %v511 = vpop.xlane.xlu0 %510
        %512 = vadd.xlane.f32.xlu0 %v488
        %v513 = vpop.xlane.xlu0 %512
        %514 = vadd.xlane.f32.xlu0 %v489
        %v515 = vpop.xlane.xlu0 %514
        %516 = vadd.xlane.f32.xlu0 %v490
        %v517 = vpop.xlane.xlu0 %516
        %518 = vadd.xlane.f32.xlu0 %v491
        %v519 = vpop.xlane.xlu0 %518
        %520 = vadd.xlane.f32.xlu0 %v492
        %v521 = vpop.xlane.xlu0 %520
        %522 = vadd.xlane.f32.xlu0 %v493
        %v523 = vpop.xlane.xlu0 %522
        %524 = vadd.xlane.f32.xlu0 %v494
        %v525 = vpop.xlane.xlu0 %524
        %526 = vadd.xlane.f32.xlu0 %v495
        %v527 = vpop.xlane.xlu0 %526
        %v528 = vmul.f32 %v497, 0.010416667
        %v529 = vmul.f32 %v499, 0.010416667
        %v530 = vmul.f32 %v501, 0.010416667
        %v531 = vmul.f32 %v503, 0.010416667
        %v532 = vmul.f32 %v505, 0.010416667
        %v533 = vmul.f32 %v507, 0.010416667
        %v534 = vmul.f32 %v509, 0.010416667
        %v535 = vmul.f32 %v511, 0.010416667
        %v536 = vmul.f32 %v513, 0.010416667
        %v537 = vmul.f32 %v515, 0.010416667
        %v538 = vmul.f32 %v517, 0.010416667
        %v539 = vmul.f32 %v519, 0.010416667
        %v540 = vmul.f32 %v521, 0.010416667
        %v541 = vmul.f32 %v523, 0.010416667
        %v542 = vmul.f32 %v525, 0.010416667
        %v543 = vmul.f32 %v527, 0.010416667
        %v544 = vadd.f32 %v528, 1e-05
        %v545 = vadd.f32 %v529, 1e-05
        %v546 = vadd.f32 %v530, 1e-05
        %v547 = vadd.f32 %v531, 1e-05
        %v548 = vadd.f32 %v532, 1e-05
        %v549 = vadd.f32 %v533, 1e-05
        %v550 = vadd.f32 %v534, 1e-05
        %v551 = vadd.f32 %v535, 1e-05
        %v552 = vadd.f32 %v536, 1e-05
        %v553 = vadd.f32 %v537, 1e-05
        %v554 = vadd.f32 %v538, 1e-05
        %v555 = vadd.f32 %v539, 1e-05
        %v556 = vadd.f32 %v540, 1e-05
        %v557 = vadd.f32 %v541, 1e-05
        %v558 = vadd.f32 %v542, 1e-05
        %v559 = vadd.f32 %v543, 1e-05
        %v560 = vrsqrt.pop %v544
        %v561 = vmul.f32 %v560, %v544
        %v562 = vmul.f32 %v561, %v560
        %v563 = vmul.f32 0.5, %v562
        %v564 = vsub.f32 1.5, %v563
        %v565 = vmul.f32 %v560, %v564
        %vm566 = vweird.f32 %v544
        %vm567 = vweird.f32 %v560
        %vm568 = vmor %vm566, %vm567
        %v569 = vsel %vm568, %v560, %v565
        %v570 = vrsqrt.pop %v545
        %v571 = vmul.f32 %v570, %v545
        %v572 = vmul.f32 %v571, %v570
        %v573 = vmul.f32 0.5, %v572
        %v574 = vsub.f32 1.5, %v573
        %v575 = vmul.f32 %v570, %v574
        %vm576 = vweird.f32 %v545
        %vm577 = vweird.f32 %v570
        %vm578 = vmor %vm576, %vm577
        %v579 = vsel %vm578, %v570, %v575
        %v580 = vrsqrt.pop %v546
        %v581 = vmul.f32 %v580, %v546
        %v582 = vmul.f32 %v581, %v580
        %v583 = vmul.f32 0.5, %v582
        %v584 = vsub.f32 1.5, %v583
        %v585 = vmul.f32 %v580, %v584
        %vm586 = vweird.f32 %v546
        %vm587 = vweird.f32 %v580
        %vm588 = vmor %vm586, %vm587
        %v589 = vsel %vm588, %v580, %v585
        %v590 = vrsqrt.pop %v547
        %v591 = vmul.f32 %v590, %v547
        %v592 = vmul.f32 %v591, %v590
        %v593 = vmul.f32 0.5, %v592
        %v594 = vsub.f32 1.5, %v593
        %v595 = vmul.f32 %v590, %v594
        %vm596 = vweird.f32 %v547
        %vm597 = vweird.f32 %v590
        %vm598 = vmor %vm596, %vm597
        %v599 = vsel %vm598, %v590, %v595
        %v600 = vrsqrt.pop %v548
        %v601 = vmul.f32 %v600, %v548
        %v602 = vmul.f32 %v601, %v600
        %v603 = vmul.f32 0.5, %v602
        %v604 = vsub.f32 1.5, %v603
        %v605 = vmul.f32 %v600, %v604
        %vm606 = vweird.f32 %v548
        %vm607 = vweird.f32 %v600
        %vm608 = vmor %vm606, %vm607
        %v609 = vsel %vm608, %v600, %v605
        %v610 = vrsqrt.pop %v549
        %v611 = vmul.f32 %v610, %v549
        %v612 = vmul.f32 %v611, %v610
        %v613 = vmul.f32 0.5, %v612
        %v614 = vsub.f32 1.5, %v613
        %v615 = vmul.f32 %v610, %v614
        %vm616 = vweird.f32 %v549
        %vm617 = vweird.f32 %v610
        %vm618 = vmor %vm616, %vm617
        %v619 = vsel %vm618, %v610, %v615
        %v620 = vrsqrt.pop %v550
        %v621 = vmul.f32 %v620, %v550
        %v622 = vmul.f32 %v621, %v620
        %v623 = vmul.f32 0.5, %v622
        %v624 = vsub.f32 1.5, %v623
        %v625 = vmul.f32 %v620, %v624
        %vm626 = vweird.f32 %v550
        %vm627 = vweird.f32 %v620
        %vm628 = vmor %vm626, %vm627
        %v629 = vsel %vm628, %v620, %v625
        %v630 = vrsqrt.pop %v551
        %v631 = vmul.f32 %v630, %v551
        %v632 = vmul.f32 %v631, %v630
        %v633 = vmul.f32 0.5, %v632
        %v634 = vsub.f32 1.5, %v633
        %v635 = vmul.f32 %v630, %v634
        %vm636 = vweird.f32 %v551
        %vm637 = vweird.f32 %v630
        %vm638 = vmor %vm636, %vm637
        %v639 = vsel %vm638, %v630, %v635
        %v640 = vrsqrt.pop %v552
        %v641 = vmul.f32 %v640, %v552
        %v642 = vmul.f32 %v641, %v640
        %v643 = vmul.f32 0.5, %v642
        %v644 = vsub.f32 1.5, %v643
        %v645 = vmul.f32 %v640, %v644
        %vm646 = vweird.f32 %v552
        %vm647 = vweird.f32 %v640
        %vm648 = vmor %vm646, %vm647
        %v649 = vsel %vm648, %v640, %v645
        %v650 = vrsqrt.pop %v553
        %v651 = vmul.f32 %v650, %v553
        %v652 = vmul.f32 %v651, %v650
        %v653 = vmul.f32 0.5, %v652
        %v654 = vsub.f32 1.5, %v653
        %v655 = vmul.f32 %v650, %v654
        %vm656 = vweird.f32 %v553
        %vm657 = vweird.f32 %v650
        %vm658 = vmor %vm656, %vm657
        %v659 = vsel %vm658, %v650, %v655
        %v660 = vrsqrt.pop %v554
        %v661 = vmul.f32 %v660, %v554
        %v662 = vmul.f32 %v661, %v660
        %v663 = vmul.f32 0.5, %v662
        %v664 = vsub.f32 1.5, %v663
        %v665 = vmul.f32 %v660, %v664
        %vm666 = vweird.f32 %v554
        %vm667 = vweird.f32 %v660
        %vm668 = vmor %vm666, %vm667
        %v669 = vsel %vm668, %v660, %v665
        %v670 = vrsqrt.pop %v555
        %v671 = vmul.f32 %v670, %v555
        %v672 = vmul.f32 %v671, %v670
        %v673 = vmul.f32 0.5, %v672
        %v674 = vsub.f32 1.5, %v673
        %v675 = vmul.f32 %v670, %v674
        %vm676 = vweird.f32 %v555
        %vm677 = vweird.f32 %v670
        %vm678 = vmor %vm676, %vm677
        %v679 = vsel %vm678, %v670, %v675
        %v680 = vrsqrt.pop %v556
        %v681 = vmul.f32 %v680, %v556
        %v682 = vmul.f32 %v681, %v680
        %v683 = vmul.f32 0.5, %v682
        %v684 = vsub.f32 1.5, %v683
        %v685 = vmul.f32 %v680, %v684
        %vm686 = vweird.f32 %v556
        %vm687 = vweird.f32 %v680
        %vm688 = vmor %vm686, %vm687
        %v689 = vsel %vm688, %v680, %v685
        %v690 = vrsqrt.pop %v557
        %v691 = vmul.f32 %v690, %v557
        %v692 = vmul.f32 %v691, %v690
        %v693 = vmul.f32 0.5, %v692
        %v694 = vsub.f32 1.5, %v693
        %v695 = vmul.f32 %v690, %v694
        %vm696 = vweird.f32 %v557
        %vm697 = vweird.f32 %v690
        %vm698 = vmor %vm696, %vm697
        %v699 = vsel %vm698, %v690, %v695
        %v700 = vrsqrt.pop %v558
        %v701 = vmul.f32 %v700, %v558
        %v702 = vmul.f32 %v701, %v700
        %v703 = vmul.f32 0.5, %v702
        %v704 = vsub.f32 1.5, %v703
        %v705 = vmul.f32 %v700, %v704
        %vm706 = vweird.f32 %v558
        %vm707 = vweird.f32 %v700
        %vm708 = vmor %vm706, %vm707
        %v709 = vsel %vm708, %v700, %v705
        %v710 = vrsqrt.pop %v559
        %v711 = vmul.f32 %v710, %v559
        %v712 = vmul.f32 %v711, %v710
        %v713 = vmul.f32 0.5, %v712
        %v714 = vsub.f32 1.5, %v713
        %v715 = vmul.f32 %v710, %v714
        %vm716 = vweird.f32 %v559
        %vm717 = vweird.f32 %v710
        %vm718 = vmor %vm716, %vm717
        %v719 = vsel %vm718, %v710, %v715
        %v720 = vmul.f32 %v464, %v569
        %v721 = vmul.f32 %v465, %v579
        %v722 = vmul.f32 %v466, %v589
        %v723 = vmul.f32 %v467, %v599
        %v724 = vmul.f32 %v468, %v609
        %v725 = vmul.f32 %v469, %v619
        %v726 = vmul.f32 %v470, %v629
        %v727 = vmul.f32 %v471, %v639
        %v728 = vmul.f32 %v472, %v649
        %v729 = vmul.f32 %v473, %v659
        %v730 = vmul.f32 %v474, %v669
        %v731 = vmul.f32 %v475, %v679
        %v732 = vmul.f32 %v476, %v689
        %v733 = vmul.f32 %v477, %v699
        %v734 = vmul.f32 %v478, %v709
        %v735 = vmul.f32 %v479, %v719
        %v737 = vperm.slane %v256, 0
        %v739 = vmul.f32 %v720, %v737
        %v740 = vmul.f32 %v721, %v737
        %v741 = vmul.f32 %v722, %v737
        %v742 = vmul.f32 %v723, %v737
        %v743 = vmul.f32 %v724, %v737
        %v744 = vmul.f32 %v725, %v737
        %v745 = vmul.f32 %v726, %v737
        %v746 = vmul.f32 %v727, %v737
        %v747 = vmul.f32 %v728, %v737
        %v748 = vmul.f32 %v729, %v737
        %v749 = vmul.f32 %v730, %v737
        %v750 = vmul.f32 %v731, %v737
        %v751 = vmul.f32 %v732, %v737
        %v752 = vmul.f32 %v733, %v737
        %v753 = vmul.f32 %v734, %v737
        %v754 = vmul.f32 %v735, %v737
        %v756 = vperm.slane %v257, 0
        %v758 = vadd.f32 %v739, %v756
        %v759 = vadd.f32 %v740, %v756
        %v760 = vadd.f32 %v741, %v756
        %v761 = vadd.f32 %v742, %v756
        %v762 = vadd.f32 %v743, %v756
        %v763 = vadd.f32 %v744, %v756
        %v764 = vadd.f32 %v745, %v756
        %v765 = vadd.f32 %v746, %v756
        %v766 = vadd.f32 %v747, %v756
        %v767 = vadd.f32 %v748, %v756
        %v768 = vadd.f32 %v749, %v756
        %v769 = vadd.f32 %v750, %v756
        %v770 = vadd.f32 %v751, %v756
        %v771 = vadd.f32 %v752, %v756
        %v772 = vadd.f32 %v753, %v756
        %v773 = vadd.f32 %v754, %v756
        %774 = vxpose.xlu0.b32.start [1/16] %v758, 128
        %775 = vxpose.xlu0.b32.cont [2/16] %v759, 128
        %776 = vxpose.xlu0.b32.cont [3/16] %v760, 128
        %777 = vxpose.xlu0.b32.cont [4/16] %v761, 128
        %778 = vxpose.xlu0.b32.cont [5/16] %v762, 128
        %779 = vxpose.xlu0.b32.cont [6/16] %v763, 128
        %780 = vxpose.xlu0.b32.cont [7/16] %v764, 128
        %781 = vxpose.xlu0.b32.cont [8/16] %v765, 128
        %782 = vxpose.xlu0.b32.cont [9/16] %v766, 128
        %783 = vxpose.xlu0.b32.cont [10/16] %v767, 128
        %784 = vxpose.xlu0.b32.cont [11/16] %v768, 128
        %785 = vxpose.xlu0.b32.cont [12/16] %v769, 128
        %786 = vxpose.xlu0.b32.cont [13/16] %v770, 128
        %787 = vxpose.xlu0.b32.cont [14/16] %v771, 128
        %788 = vxpose.xlu0.b32.cont [15/16] %v772, 128
        %789 = vxpose.xlu0.b32.end [16/16] %v773, 128
        %v790 = vpop.trf.xlu0
        %v791 = vpop.trf.xlu0
        %v792 = vpop.trf.xlu0
        %v793 = vpop.trf.xlu0
        %v794 = vpop.trf.xlu0
        %v795 = vpop.trf.xlu0
        %v796 = vpop.trf.xlu0
        %v797 = vpop.trf.xlu0
        %v798 = vpop.trf.xlu0
        %v799 = vpop.trf.xlu0
        %v800 = vpop.trf.xlu0
        %v801 = vpop.trf.xlu0
        %v802 = vpop.trf.xlu0
        %v803 = vpop.trf.xlu0
        %v804 = vpop.trf.xlu0
        %v805 = vpop.trf.xlu0
        %806 = vst [vmem:[%s242] sm:$0xff] %v790
        %807 = vst [vmem:[%s242 + $0x8] sm:$0xff] %v791
        %808 = vst [vmem:[%s242 + $0x10] sm:$0xff] %v792
        %809 = vst [vmem:[%s242 + $0x18] sm:$0xff] %v793
        %810 = vst [vmem:[%s242 + $0x20] sm:$0xff] %v794
        %811 = vst [vmem:[%s242 + $0x28] sm:$0xff] %v795
        %812 = vst [vmem:[%s242 + $0x30] sm:$0xff] %v796
        %813 = vst [vmem:[%s242 + $0x38] sm:$0xff] %v797
        %814 = vst [vmem:[%s242 + $0x40] sm:$0xff] %v798
        %815 = vst [vmem:[%s242 + $0x48] sm:$0xff] %v799
        %816 = vst [vmem:[%s242 + $0x50] sm:$0xff] %v800
        %817 = vst [vmem:[%s242 + $0x58] sm:$0xff] %v801
        %s818 = sand.u32 %s153, 1
        %s819 = scalar_lea.sflag [#allocation3], %s818
        %s820 = sand.u32 %s153, 1
        %s821 = smul.addr %s820, 96
        %s822 = scalar_lea.vmem [#allocation2], %s821
        // Predicated region
        $region41: #{tpu_custom_call.1} parent=39 // pred_check
          %p823 = pneg %p163
        $region42: #{tpu_custom_call.1} parent=39 // pred_check_branch
          %825 = sbr.rel (%p823) target = $region44
        $region43: #{tpu_custom_call.1} parent=39 // pred_region
          %827 = vsyncadd %s819, 0
          %s828 = smul.addr %s23, 12
          %s829 = sadd.s32 %s24, %s828
          %s830 = smul.addr %s829, 8
          %s831 = scalar_lea.hbm %s5, %s830
          %s832 = sshll.u32 %s822, 4
          %s833 = int_to_ptr.vmem [resolvable:$true] %s832
          %s834 = sshll.u32 %s831, 4
          %s835 = int_to_ptr.hbm [resolvable:$true] %s834
          %840 = dma.vmem_to_hbm [thread:$0]  %s833, 1536, %s835, %s819, 128, 128, 8
        $region44: #{tpu_custom_call.1} parent=39 // pred_fallthru
          _
      $region40: #{tpu_custom_call.1} parent=5 // pred_fallthru
        _
      %p841 = scmp.le.s32.totalorder 2, %s14
      // Predicated region
      $region45: #{tpu_custom_call.1} parent=5 // pred_check
        %p842 = pneg %p841
      $region46: #{tpu_custom_call.1} parent=5 // pred_check_branch
        %844 = sbr.rel (%p842) target = $region48
      $region47: #{tpu_custom_call.1} parent=5 // pred_region
        %s845 = ssub.s32 %s14, 2
        // Predicated region
        $region49: #{tpu_custom_call.1} parent=47 // pred_check
          %p846 = pneg %p169
        $region50: #{tpu_custom_call.1} parent=47 // pred_check_branch
          %848 = sbr.rel (%p846) target = $region52
        $region51: #{tpu_custom_call.1} parent=47 // pred_region
          %s849 = sand.u32 %s154, 1
          %s850 = scalar_lea.sflag [#allocation3], %s849
          %s851 = sand.u32 %s154, 1
          %s852 = smul.addr %s851, 96
          %s853 = scalar_lea.vmem [#allocation2], %s852
          %855 = dma.done %s850, 1536
        $region52: #{tpu_custom_call.1} parent=47 // pred_fallthru
          _
      $region48: #{tpu_custom_call.1} parent=5 // pred_fallthru
        _
    $region6: #{tpu_custom_call.1} parent=1 // loop_footer
      %s18 = sadd.s32 1, %s14
    $region7: #{tpu_custom_call.1} parent=1 // loop_footer_branch
      %13 = sbr.rel target = $region3
    $region8: #{tpu_custom_call.1} parent=1 // loop_exit
      _
    %856 = vsyncpa [#allocation3], 1
    %s857 = scalar_lea.sflag [#allocation3], 1
    %858 = vsyncpa %s857, 1

</llo_original>
